<compile_context>
chip_gen: v6e
topology: v6e:2x2x1
jax: 0.10.0
libtpu: 0.0.40
codegen_flags: <defaults>
</compile_context>

<pallas_src>
import functools

import jax
import jax.numpy as jnp
from jax.experimental import pallas as pl
from jax.experimental.pallas import tpu as pltpu

_TARGET_BLOCK_BYTES = 4 * 1024 * 1024   # ~4 MiB per input block (double-buffered by Pallas)
_MIN_BLOCK_BYTES = 512 * 1024           # don't shrink blocks below this just for step count
_MAX_BLOCK_BYTES = 8 * 1024 * 1024      # minimal legal block above this -> fall back
_MIN_PALLAS_BYTES = 1 * 1024 * 1024     # below this, XLA's fused reduce wins — skip Pallas
_MIN_GRID_STEPS = 8                     # enough steps to hide DMA prologue / feed 2 TCs
_UNROLL_T_MAX = 32                      # fully unroll the T accumulation up to this
_VMEM_LIMIT_BYTES = 32 * 1024 * 1024    # explicit scoped-VMEM budget (safe on v5e/v6e/v7x)


def _avg_consensus_kernel(x_ref, o_ref, *, t, inv_t):
    """x_ref: (bn, T, bc) input block; o_ref: (bn, bc) sublane-dense output block."""
    if t <= _UNROLL_T_MAX:
        # Unrolled (bn, bc) slice-adds: the convert-to-f32 is fused into each add, so no
        # (bn, T, bc) f32 temp is materialized.
        acc = x_ref[:, 0, :].astype(jnp.float32)
        for k in range(1, t):
            acc = acc + x_ref[:, k, :].astype(jnp.float32)
    else:
        acc = jnp.sum(x_ref[...], axis=1, dtype=jnp.float32)
    # Scale by precomputed 1/T: a VPU multiply, not a divide.
    o_ref[...] = (acc * inv_t).astype(o_ref.dtype)


def avg_consensus(x: jax.Array, dim: int = 1, *, force_pallas: bool = False) -> jax.Array:
    """Pallas equivalent of AvgConsensus(dim): mean over `dim`, keepdim=True."""
    if x.ndim != 3 or dim != 1:
        # TODO(synk): only the (N, T, C)/dim=1 layout (the r50_head usage) is lowered to
        # Pallas; other ranks/dims fall back to XLA's fused reduce.
        return jnp.mean(x, axis=dim, keepdims=True)

    n, t, c = x.shape
    if n == 0 or c == 0 or t == 0:
        return jnp.mean(x, axis=1, keepdims=True)
    if t == 1:
        return x  # mean over a length-1 dim with keepdim=True is the identity

    itemsize = jnp.dtype(x.dtype).itemsize
    total_bytes = n * t * c * itemsize

    # Tiny inputs: a standalone pallas_call costs more than it saves.
    if not force_pallas and total_bytes < _MIN_PALLAS_BYTES:
        return jnp.mean(x.astype(jnp.float32), axis=1, keepdims=True).astype(x.dtype)

    # Sublane packing factor of the dtype (f32 -> 8, bf16 -> 16, int8/fp8 -> 32): the 2-D
    # output block's second-minor dim (bn) must be a multiple of 8, and stays store-dense
    # when it's a multiple of this.
    subl = 8 * max(1, 4 // itemsize)

    # ---- channel tiling: lane dim a multiple of 128 (or full C), sized so that even a
    # minimal (subl batch rows) block stays within the per-block budget. ----
    if c <= 128 or c * t * itemsize * subl <= _TARGET_BLOCK_BYTES:
        bc = c
    else:
        bc = max(128, (_TARGET_BLOCK_BYTES // (t * itemsize * subl)) // 128 * 128)
        bc = min(bc, pl.cdiv(c, 128) * 128)
    row_bytes = t * min(bc, c) * itemsize

    # Safety valve: if even a minimal legal block would crowd the scoped VMEM budget once
    # double-buffered, stay on XLA's fused reduce (compile-safe for huge T with small C).
    if row_bytes * min(n, subl) > _MAX_BLOCK_BYTES:
        # TODO(synk): add a T grid axis + f32 accumulator for very large per-sample T*C.
        return jnp.mean(x.astype(jnp.float32), axis=1, keepdims=True).astype(x.dtype)

    # ---- batch tiling: ~_TARGET_BLOCK_BYTES per block counting input + output + f32 acc ----
    per_row_bytes = (t + 1) * min(bc, c) * itemsize + 4 * min(bc, c)
    bn = max(1, _TARGET_BLOCK_BYTES // per_row_bytes)

    # Enough grid steps to hide the DMA prologue/epilogue and feed both v7x TensorCores
    # (>= ~8 total steps, >= 4 batch blocks when n allows), without dropping blocks below
    # ~512 KiB unless unavoidable.
    steps_c = pl.cdiv(c, bc)
    want_batch_steps = min(n, max(1, pl.cdiv(_MIN_GRID_STEPS, steps_c)))
    if n > 1 and want_batch_steps > 1:
        bn_steps = pl.cdiv(n, want_batch_steps)
        if bn_steps * row_bytes >= _MIN_BLOCK_BYTES:
            bn = min(bn, bn_steps)
        else:
            bn = min(bn, pl.cdiv(n, min(n, 4)))
    if bn < n:
        bn = max(subl, (bn // subl) * subl)
    if bn >= n:
        bn = n
    steps_n = pl.cdiv(n, bn)

    # If the batch axis alone is too short, split channels further to restore pipelining.
    if steps_n * steps_c < _MIN_GRID_STEPS and bc > 128:
        want_c_steps = pl.cdiv(_MIN_GRID_STEPS, steps_n)
        bc_try = max(128, pl.cdiv(pl.cdiv(c, want_c_steps), 128) * 128)
        if bc_try < bc and bn * t * bc_try * itemsize >= _MIN_BLOCK_BYTES:
            bc = bc_try
            steps_c = pl.cdiv(c, bc)

    grid = (steps_n, steps_c)
    kernel = functools.partial(_avg_consensus_kernel, t=t, inv_t=float(1.0 / t))

    # Note: partial batch / channel blocks are safe — the reduction is over T (fully
    # contained in each block), so padded rows/lanes only produce padded output elements
    # whose HBM writeback is discarded by Pallas.
    # TODO(synk): when T is not a multiple of `subl` (e.g. bf16 T=8 or TSN's T=3), the
    # (N, T, C) HBM layout itself is sublane-padded and reads are amplified; avoiding that
    # requires the producer to hand over a pre-flattened (N*T, C) array.
    out2d = pl.pallas_call(
        kernel,
        out_shape=jax.ShapeDtypeStruct((n, c), x.dtype),
        grid_spec=pl.GridSpec(
            grid=grid,
            in_specs=[pl.BlockSpec((bn, t, bc), lambda i, j: (i, 0, j))],
            out_specs=pl.BlockSpec((bn, bc), lambda i, j: (i, j)),
        ),
        compiler_params=pltpu.CompilerParams(
            dimension_semantics=("parallel", "parallel"),
            vmem_limit_bytes=_VMEM_LIMIT_BYTES,
        ),
        cost_estimate=pl.CostEstimate(
            flops=n * (t + 1) * c,
            transcendentals=0,
            bytes_accessed=total_bytes + n * c * itemsize,
        ),
    )(x)

    return jnp.expand_dims(out2d, axis=1)  # keepdim=True -> (N, 1, C)


if __name__ == "__main__":
    # 1) Small shape matching the module's typical forward, forced through the Pallas path.
    key = jax.random.PRNGKey(0)
    N, T, C = 2, 8, 128
    x = jax.random.normal(key, (N, T, C), dtype=jnp.float32)
    out = jax.block_until_ready(avg_consensus(x, force_pallas=True))
    ref = jnp.mean(x, axis=1, keepdims=True)
    assert out.shape == (N, 1, C)
    assert out.dtype == x.dtype
    assert jnp.allclose(out, ref, atol=1e-5, rtol=1e-5)

    # 2) Multi-block grid with an uneven batch, bf16 input (exercises batch blocking with
    #    a partial last block, sublane-rounded bn, and f32 accumulation).
    N2, T2, C2 = 37, 8, 256
    x2 = jax.random.normal(jax.random.PRNGKey(0), (N2, T2, C2), dtype=jnp.bfloat16)
    out2 = jax.block_until_ready(avg_consensus(x2, force_pallas=True))
    ref2 = jnp.mean(x2.astype(jnp.float32), axis=1, keepdims=True).astype(jnp.bfloat16)
    assert out2.shape == (N2, 1, C2)
    assert out2.dtype == x2.dtype
    assert jnp.allclose(out2.astype(jnp.float32), ref2.astype(jnp.float32),
                        atol=2e-2, rtol=2e-2)

    # 3) TSN-style num_segments=3 with a non-128-multiple channel dim, multi-block batch.
    N3, T3, C3 = 16, 3, 96
    x3 = jax.random.normal(jax.random.PRNGKey(0), (N3, T3, C3), dtype=jnp.float32)
    out3 = jax.block_until_ready(avg_consensus(x3, force_pallas=True))
    ref3 = jnp.mean(x3, axis=1, keepdims=True)
    assert out3.shape == (N3, 1, C3)
    assert jnp.allclose(out3, ref3, atol=1e-5, rtol=1e-5)

    # 4) Tiny-input fallback path (no Pallas call; semantics must still match).
    x4 = jax.random.normal(jax.random.PRNGKey(0), (2, 8, 32), dtype=jnp.float32)
    out4 = jax.block_until_ready(avg_consensus(x4))
    assert out4.shape == (2, 1, 32)
    assert jnp.allclose(out4, jnp.mean(x4, axis=1, keepdims=True), atol=1e-5, rtol=1e-5)

    print("KERNEL_OK")
</pallas_src>

<mosaic_0001>
module attributes {stable_mosaic.version = 11 : i64} {
  func.func @_avg_consensus_kernel(%arg0: i32, %arg1: i32, %arg2: memref<2x8x128xf32, #tpu.memory_space<vmem>>, %arg3: memref<2x128xf32, #tpu.memory_space<vmem>>) attributes {dimension_semantics = [#tpu.dimension_semantics<parallel>, #tpu.dimension_semantics<parallel>], iteration_bounds = array<i64: 1, 1>, scalar_prefetch = 0 : i64, scratch_operands = 0 : i64, tpu.core_type = #tpu.core_type<tc>, window_params = [{transform_indices = @transform_0, window_bounds = array<i64: 2, 8, 128>}, {transform_indices = @transform_1, window_bounds = array<i64: 2, 128>}]} {
    %c0 = arith.constant 0 : index
    %c0_0 = arith.constant 0 : index
    %c0_1 = arith.constant 0 : index
    %0 = vector.load %arg2[%c0, %c0_0, %c0_1] : memref<2x8x128xf32, #tpu.memory_space<vmem>>, vector<2x1x128xf32>
    %1 = vector.shape_cast %0 : vector<2x1x128xf32> to vector<2x128xf32>
    %c0_2 = arith.constant 0 : index
    %c1 = arith.constant 1 : index
    %c0_3 = arith.constant 0 : index
    %2 = vector.load %arg2[%c0_2, %c1, %c0_3] : memref<2x8x128xf32, #tpu.memory_space<vmem>>, vector<2x1x128xf32>
    %3 = vector.shape_cast %2 : vector<2x1x128xf32> to vector<2x128xf32>
    %4 = arith.addf %1, %3 : vector<2x128xf32>
    %c0_4 = arith.constant 0 : index
    %c2 = arith.constant 2 : index
    %c0_5 = arith.constant 0 : index
    %5 = vector.load %arg2[%c0_4, %c2, %c0_5] : memref<2x8x128xf32, #tpu.memory_space<vmem>>, vector<2x1x128xf32>
    %6 = vector.shape_cast %5 : vector<2x1x128xf32> to vector<2x128xf32>
    %7 = arith.addf %4, %6 : vector<2x128xf32>
    %c0_6 = arith.constant 0 : index
    %c3 = arith.constant 3 : index
    %c0_7 = arith.constant 0 : index
    %8 = vector.load %arg2[%c0_6, %c3, %c0_7] : memref<2x8x128xf32, #tpu.memory_space<vmem>>, vector<2x1x128xf32>
    %9 = vector.shape_cast %8 : vector<2x1x128xf32> to vector<2x128xf32>
    %10 = arith.addf %7, %9 : vector<2x128xf32>
    %c0_8 = arith.constant 0 : index
    %c4 = arith.constant 4 : index
    %c0_9 = arith.constant 0 : index
    %11 = vector.load %arg2[%c0_8, %c4, %c0_9] : memref<2x8x128xf32, #tpu.memory_space<vmem>>, vector<2x1x128xf32>
    %12 = vector.shape_cast %11 : vector<2x1x128xf32> to vector<2x128xf32>
    %13 = arith.addf %10, %12 : vector<2x128xf32>
    %c0_10 = arith.constant 0 : index
    %c5 = arith.constant 5 : index
    %c0_11 = arith.constant 0 : index
    %14 = vector.load %arg2[%c0_10, %c5, %c0_11] : memref<2x8x128xf32, #tpu.memory_space<vmem>>, vector<2x1x128xf32>
    %15 = vector.shape_cast %14 : vector<2x1x128xf32> to vector<2x128xf32>
    %16 = arith.addf %13, %15 : vector<2x128xf32>
    %c0_12 = arith.constant 0 : index
    %c6 = arith.constant 6 : index
    %c0_13 = arith.constant 0 : index
    %17 = vector.load %arg2[%c0_12, %c6, %c0_13] : memref<2x8x128xf32, #tpu.memory_space<vmem>>, vector<2x1x128xf32>
    %18 = vector.shape_cast %17 : vector<2x1x128xf32> to vector<2x128xf32>
    %19 = arith.addf %16, %18 : vector<2x128xf32>
    %c0_14 = arith.constant 0 : index
    %c7 = arith.constant 7 : index
    %c0_15 = arith.constant 0 : index
    %20 = vector.load %arg2[%c0_14, %c7, %c0_15] : memref<2x8x128xf32, #tpu.memory_space<vmem>>, vector<2x1x128xf32>
    %21 = vector.shape_cast %20 : vector<2x1x128xf32> to vector<2x128xf32>
    %22 = arith.addf %19, %21 : vector<2x128xf32>
    %cst = arith.constant 1.250000e-01 : f32
    %23 = vector.broadcast %cst : f32 to vector<2x128xf32>
    %24 = arith.mulf %22, %23 : vector<2x128xf32>
    %c0_16 = arith.constant 0 : index
    %c0_17 = arith.constant 0 : index
    %25 = vector.load %arg3[%c0_16, %c0_17] : memref<2x128xf32, #tpu.memory_space<vmem>>, vector<2x128xf32>
    tpu.vector_store %arg3[%c0_16, %c0_17], %24 {strides = array<i32>} : memref<2x128xf32, #tpu.memory_space<vmem>>, vector<2x128xf32>,
    return
  }
  func.func @transform_0(%arg0: i32, %arg1: i32) -> (i32, i32, i32) {
    %c0_i32 = arith.constant 0 : i32
    %c0_i32_0 = arith.constant 0 : i32
    return %arg0, %c0_i32, %arg1 : i32, i32, i32
  }
  func.func @transform_1(%arg0: i32, %arg1: i32) -> (i32, i32) {
    %c0_i32 = arith.constant 0 : i32
    return %arg0, %arg1 : i32, i32
  }
}

</mosaic_0001>

<llo_original>
// kernel: tpu_custom_call.1
$region0: #{tpu_custom_call.1}
  #allocation0 [shape = 'u32[]', space=smem, size = 0x4, offset = 0x4, fixed_abs, tag = 'smem constant byte address 0x4 - core index']
  #allocation1 [shape = 'u32[144,128]{1,0:T(1,128)}', space=vmem, size = 0x12000, scoped, tag = 'internal scratch']
  %s0 = inlined_call_operand.hbm [shape: f32[2,8,128], index: 0, kind: input, shape index: {}]
  %s1 = inlined_call_operand.hbm [shape: f32[2,128], index: 1, kind: output, shape index: {}]
  %s2 = sld [smem:[#allocation0]]
  $region18: #{tpu_custom_call.1} parent=0
    _
  %s4 = ssub.s32 1, %s2
  %s5 = scalar_select 0, %s4, %s2
  $region1: #{tpu_custom_call.1} parent=0
    #allocation2 [shape = 'u8[8192]{0}', space=vmem, size = 0x2000, scoped, tag = 'input window, operand 0, single buffered']
    #allocation3 [shape = 's32[1]{0}', space=sflag, size = 0x4, scoped, tag = 'scoped memory for tpu_custom_call.1']
    #allocation4 [shape = 's32[1]{0}', space=sflag, size = 0x4, scoped, tag = 'scoped memory for tpu_custom_call.1']
    #allocation5 [shape = 'u8[1024]{0}', space=vmem, size = 0x400, scoped, tag = 'output window, operand 0, single buffered']
    %6 = vsyncpa [#allocation3], 0
    %7 = vsyncpa [#allocation4], 0
    // Predicated region
    $region2: #{tpu_custom_call.1} parent=1 // pred_check
      _
    $region3: #{tpu_custom_call.1} parent=1 // pred_check_branch
      %9 = sbr.rel (0) target = $region5
    $region4: #{tpu_custom_call.1} parent=1 // pred_region
      %s11 = ssub.s32 256, 256
      %12 = vsyncadd [#allocation3], %s11
      %s13 = sshll.u32 [#allocation2], 4
      %s14 = int_to_ptr.vmem [resolvable:$true] %s13
      %19 = dma.hbm_to_vmem [thread:$0]  %s0, 256, %s14, [#allocation3], 128, 128, 8
    $region5: #{tpu_custom_call.1} parent=1 // pred_fallthru
      _
    // Predicated region
    $region6: #{tpu_custom_call.1} parent=1 // pred_check
      _
    $region7: #{tpu_custom_call.1} parent=1 // pred_check_branch
      %21 = sbr.rel (0) target = $region9
    $region8: #{tpu_custom_call.1} parent=1 // pred_region
      %22 = dma.done [#allocation3], 256
    $region9: #{tpu_custom_call.1} parent=1 // pred_fallthru
      _
    %v23 = vld [vmem:[#allocation2] sm:$0x1]
    %v24 = vld [vmem:[#allocation2 + $0x8] sm:$0x1]
    %v25 = vld [vmem:[#allocation2 + $0x1] sm:$0x1]
    %v26 = vld [vmem:[#allocation2 + $0x9] sm:$0x1]
    %v27 = vadd.f32 %v23, %v25
    %v28 = vadd.f32 %v24, %v26
    %v29 = vld [vmem:[#allocation2 + $0x2] sm:$0x1]
    %v30 = vld [vmem:[#allocation2 + $0xa] sm:$0x1]
    %v31 = vadd.f32 %v27, %v29
    %v32 = vadd.f32 %v28, %v30
    %v33 = vld [vmem:[#allocation2 + $0x3] sm:$0x1]
    %v34 = vld [vmem:[#allocation2 + $0xb] sm:$0x1]
    %v35 = vadd.f32 %v31, %v33
    %v36 = vadd.f32 %v32, %v34
    %v37 = vld [vmem:[#allocation2 + $0x4] sm:$0x1]
    %v38 = vld [vmem:[#allocation2 + $0xc] sm:$0x1]
    %v39 = vadd.f32 %v35, %v37
    %v40 = vadd.f32 %v36, %v38
    %v41 = vld [vmem:[#allocation2 + $0x5] sm:$0x1]
    %v42 = vld [vmem:[#allocation2 + $0xd] sm:$0x1]
    %v43 = vadd.f32 %v39, %v41
    %v44 = vadd.f32 %v40, %v42
    %v45 = vld [vmem:[#allocation2 + $0x6] sm:$0x1]
    %v46 = vld [vmem:[#allocation2 + $0xe] sm:$0x1]
    %v47 = vadd.f32 %v43, %v45
    %v48 = vadd.f32 %v44, %v46
    %v49 = vld [vmem:[#allocation2 + $0x7] sm:$0x1]
    %v50 = vld [vmem:[#allocation2 + $0xf] sm:$0x1]
    %v51 = vadd.f32 %v47, %v49
    %v52 = vadd.f32 %v48, %v50
    %v53 = vmul.f32 %v51, 0.125
    %v54 = vmul.f32 %v52, 0.125
    %v57 = vrot.slane %v54, 7
    %vm58 = vcmask 1041409
    %v59 = vsel %vm58, %v57, %v53
    %61 = vst [vmem:[#allocation5] sm:$0x3] %v59
    // Predicated region
    $region10: #{tpu_custom_call.1} parent=1 // pred_check
      _
    $region11: #{tpu_custom_call.1} parent=1 // pred_check_branch
      %63 = sbr.rel (0) target = $region13
    $region12: #{tpu_custom_call.1} parent=1 // pred_region
      %s65 = ssub.s32 32, 32
      %66 = vsyncadd [#allocation4], %s65
      %s68 = sshll.u32 [#allocation5], 4
      %s69 = int_to_ptr.vmem [resolvable:$true] %s68
      %71 = dma.vmem_to_hbm [thread:$0]  %s69, 32, %s1, [#allocation4]
    $region13: #{tpu_custom_call.1} parent=1 // pred_fallthru
      _
    // Predicated region
    $region14: #{tpu_custom_call.1} parent=1 // pred_check
      _
    $region15: #{tpu_custom_call.1} parent=1 // pred_check_branch
      %73 = sbr.rel (0) target = $region17
    $region16: #{tpu_custom_call.1} parent=1 // pred_region
      %74 = dma.done [#allocation4], 32
    $region17: #{tpu_custom_call.1} parent=1 // pred_fallthru
      _
    %75 = vsyncpa [#allocation3], 1
    %76 = vsyncpa [#allocation4], 1

</llo_original>
